<compile_context>
chip_gen: v7x
topology: tpu7x:2x2x1
jax: 0.10.0
libtpu: 0.0.40
codegen_flags: <defaults>
</compile_context>

<pallas_src>
import functools

import jax
import jax.numpy as jnp
import numpy as np
from jax import lax
from jax.experimental import pallas as pl
from jax.experimental.pallas import tpu as pltpu

BN_EPS = 1e-5
_F32_MIN = float(jnp.finfo(jnp.float32).min)


# ------------------------------ host-side constants ------------------------------

def _out_hw(H, W, stride):
    return (H - 1) // stride + 1, (W - 1) // stride + 1


def _pick_block(n, cap):
    """Largest divisor of n that is <= cap."""
    b = min(n, cap)
    while n % b:
        b -= 1
    return b


def _build_aux(H, W, mode):
    """(5, H*W) f32 constant: rows 0-3 = left/right/up/down neighbour-validity masks
    (0/1) on the flat pixel axis; row 4 = 1/window_count (count_include_pad=False),
    used by the stride-1 avg path (multiply, never divide, in the hot loop)."""
    P = H * W
    col = np.arange(P) % W
    row = np.arange(P) // W
    left = (col > 0).astype(np.float32)
    right = (col < W - 1).astype(np.float32)
    up = (row > 0).astype(np.float32)
    down = (row < H - 1).astype(np.float32)
    if mode == 'avg':
        cnt = (1.0 + left + right) * (1.0 + up + down)
        inv = (1.0 / cnt).astype(np.float32)
    else:
        inv = np.ones((P,), np.float32)
    return jnp.asarray(np.stack([left, right, up, down, inv]).astype(np.float32))


def _build_sel(H, W, H_out, W_out, stride, mode):
    """(H*W, H_out*W_out) selection matrix: column m has one non-zero at the pixel it
    selects, so `pooled @ sel` folds the pooling stride (and, for avg, the
    count_include_pad=False normalization) into a single lane-dense MXU matmul."""
    P, P_out = H * W, H_out * W_out
    i = np.arange(H_out)
    j = np.arange(W_out)
    src = (stride * i)[:, None] * W + (stride * j)[None, :]
    dst = i[:, None] * W_out + j[None, :]
    if mode == 'avg':
        rows_v = np.minimum(stride * i + 1, H - 1) - np.maximum(stride * i - 1, 0) + 1
        cols_v = np.minimum(stride * j + 1, W - 1) - np.maximum(stride * j - 1, 0) + 1
        val = 1.0 / (rows_v[:, None] * cols_v[None, :])
    else:
        val = np.ones((H_out, W_out))
    sel = np.zeros((P, P_out), np.float32)
    sel[src.ravel(), dst.ravel()] = val.ravel()
    return jnp.asarray(sel)


# ------------------------------ in-kernel pooling ------------------------------

def _pool_flat(y, aux_ref, *, W, P, mode):
    """3x3 / pad-1 / stride-1 pooling of flat (rows, H*W) planes.

    Shifts are lane rolls (XLU slot, free alongside the VPU work); borders are handled
    with precomputed 0/1 masks.  No padded scratch, no per-row scatters, no masked stores.
    """
    m_l = aux_ref[0:1, :]
    m_r = aux_ref[1:2, :]
    m_u = aux_ref[2:3, :]
    m_d = aux_ref[3:4, :]

    def shifted(v, k, m):
        r = pltpu.roll(v, shift=k % P, axis=1)
        if mode == 'avg':
            return r * m                          # invalid neighbours contribute 0 to the sum
        return jnp.where(m != 0.0, r, _F32_MIN)   # invalid neighbours never win the max

    red = jnp.add if mode == 'avg' else jnp.maximum
    hh = red(red(shifted(y, 1, m_l), y), shifted(y, -1, m_r))        # horizontal 3-tap
    return red(red(shifted(hh, W, m_u), hh), shifted(hh, -W, m_d))   # vertical 3-tap


def _finalize(pooled, aux_ref, sel_ref, *, mode, stride):
    if stride == 1:
        if mode == 'avg':
            return pooled * aux_ref[4:5, :]       # count_include_pad=False (precomputed 1/cnt)
        return pooled
    # stride fold (+ avg normalization) as one lane-dense MXU matmul -> lane-dense output
    return jnp.dot(pooled, sel_ref[...], preferred_element_type=jnp.float32)


def _pooling_kernel(*refs, W, P, P_out, mode, stride, fused):
    """One grid step: a (B_blk, C_blk) tile.  Optionally ReLU + 1x1 conv (BN folded) first."""
    if fused:
        x_ref, w_ref, b_ref, aux_ref = refs[:4]
        rest = refs[4:]
    else:
        x_ref, aux_ref = refs[:2]
        rest = refs[2:]
    sel_ref = rest[0] if stride > 1 else None
    o_ref = rest[-1]

    if fused:
        w = w_ref[...]                                                    # weight stays resident
        b = b_ref[...]

    for bi in range(x_ref.shape[0]):              # static unroll over the batch block
        if fused:
            xr = jnp.maximum(x_ref[bi], 0.0).astype(jnp.float32)          # ReLU, (C_in, P)
            y = jnp.dot(w, xr, preferred_element_type=jnp.float32) + b    # 1x1 conv + BN bias
        else:
            y = x_ref[bi].astype(jnp.float32)                             # (C_blk, P)
        pooled = _pool_flat(y, aux_ref, W=W, P=P, mode=mode)
        o_ref[bi] = _finalize(pooled, aux_ref, sel_ref,
                              mode=mode, stride=stride).astype(o_ref.dtype)


# ----------------------------------- wrappers -----------------------------------

def fused_relu_conv_bn_pool(x, w, gamma, beta, mean, var, stride, mode):
    """Fused ReLUConvBN(1x1, eval-mode BN) + 3x3 pooling.  x: (N, C_in, H, W) -> NCHW out."""
    N, C_in, H, Wd = x.shape
    C_out = w.shape[0]
    H_out, W_out = _out_hw(H, Wd, stride)
    P, P_out = H * Wd, H_out * W_out

    scale = gamma / jnp.sqrt(var + BN_EPS)
    w_folded = (w * scale[:, None]).astype(jnp.float32)           # fold BN scale into conv
    bias = (beta - mean * scale).reshape(C_out, 1).astype(jnp.float32)
    x_flat = x.reshape(N, C_in, P)                                # free (contiguous) reshape

    b_blk = _pick_block(N, 8)
    co_blk = _pick_block(C_out, 32)
    aux = _build_aux(H, Wd, mode)

    inputs = [x_flat, w_folded, bias, aux]
    in_specs = [
        pl.BlockSpec((b_blk, C_in, P), lambda n, c: (n, 0, 0)),
        pl.BlockSpec((co_blk, C_in), lambda n, c: (c, 0)),
        pl.BlockSpec((co_blk, 1), lambda n, c: (c, 0)),
        pl.BlockSpec((5, P), lambda n, c: (0, 0)),
    ]
    if stride > 1:
        inputs.append(_build_sel(H, Wd, H_out, W_out, stride, mode))
        in_specs.append(pl.BlockSpec((P, P_out), lambda n, c: (0, 0)))

    kernel = functools.partial(_pooling_kernel, W=Wd, P=P, P_out=P_out,
                               mode=mode, stride=stride, fused=True)
    out = pl.pallas_call(
        kernel,
        out_shape=jax.ShapeDtypeStruct((N, C_out, P_out), x.dtype),
        grid=(N // b_blk, C_out // co_blk),
        in_specs=in_specs,
        out_specs=pl.BlockSpec((b_blk, co_blk, P_out), lambda n, c: (n, c, 0)),
        compiler_params=pltpu.CompilerParams(
            dimension_semantics=("parallel", "parallel")),
    )(*inputs)
    return out.reshape(N, C_out, H_out, W_out)


def pool3x3(x, stride, mode):
    """AvgPool2d(3, stride, padding=1, count_include_pad=False) / MaxPool2d(3, stride, 1)."""
    N, C, H, Wd = x.shape
    H_out, W_out = _out_hw(H, Wd, stride)
    P, P_out = H * Wd, H_out * W_out

    x_flat = x.reshape(N, C, P)                                   # free (contiguous) reshape
    b_blk = _pick_block(N, 8)
    c_blk = _pick_block(C, 32)
    aux = _build_aux(H, Wd, mode)

    inputs = [x_flat, aux]
    in_specs = [
        pl.BlockSpec((b_blk, c_blk, P), lambda n, c: (n, c, 0)),
        pl.BlockSpec((5, P), lambda n, c: (0, 0)),
    ]
    if stride > 1:
        inputs.append(_build_sel(H, Wd, H_out, W_out, stride, mode))
        in_specs.append(pl.BlockSpec((P, P_out), lambda n, c: (0, 0)))

    kernel = functools.partial(_pooling_kernel, W=Wd, P=P, P_out=P_out,
                               mode=mode, stride=stride, fused=False)
    out = pl.pallas_call(
        kernel,
        out_shape=jax.ShapeDtypeStruct((N, C, P_out), x.dtype),
        grid=(N // b_blk, C // c_blk),
        in_specs=in_specs,
        out_specs=pl.BlockSpec((b_blk, c_blk, P_out), lambda n, c: (n, c, 0)),
        compiler_params=pltpu.CompilerParams(
            dimension_semantics=("parallel", "parallel")),
    )(*inputs)
    return out.reshape(N, C, H_out, W_out)


class PoolingPallas:
    """JAX/Pallas equivalent of the PyTorch Pooling module (NCHW in / NCHW out)."""

    def __init__(self, C_in, C_out, stride, mode, key):
        if mode not in ('avg', 'max'):
            raise ValueError('Invalid mode={:} in Pooling'.format(mode))
        self.stride = stride
        self.mode = mode
        self.has_pre = C_in != C_out
        if self.has_pre:
            k1, k2, k3, k4, k5 = jax.random.split(key, 5)
            # deterministic synthetic ReLUConvBN(C_in, C_out, 1, 1, 0, 1) parameters (eval-mode BN)
            self.w = 0.1 * jax.random.normal(k1, (C_out, C_in), jnp.float32)
            self.gamma = 1.0 + 0.1 * jax.random.normal(k2, (C_out,), jnp.float32)
            self.beta = 0.1 * jax.random.normal(k3, (C_out,), jnp.float32)
            self.mean = 0.1 * jax.random.normal(k4, (C_out,), jnp.float32)
            self.var = jnp.abs(jax.random.normal(k5, (C_out,), jnp.float32)) + 0.5

    def __call__(self, x_nchw):
        if self.has_pre:
            return fused_relu_conv_bn_pool(x_nchw, self.w, self.gamma, self.beta,
                                           self.mean, self.var, self.stride, self.mode)
        return pool3x3(x_nchw, self.stride, self.mode)


# ------------------------------ pure-JAX reference -------------------------------

def _ref_forward(x_nchw, mod):
    x = x_nchw
    if mod.has_pre:
        scale = mod.gamma / jnp.sqrt(mod.var + BN_EPS)
        w_folded = mod.w * scale[:, None]
        bias = mod.beta - mod.mean * scale
        xr = jnp.maximum(x, 0.0)
        x = (jnp.einsum('oc,nchw->nohw', w_folded, xr)
             + bias[None, :, None, None]).astype(x.dtype)
    s = mod.stride
    pad = ((0, 0), (0, 0), (1, 1), (1, 1))
    if mod.mode == 'max':
        return lax.reduce_window(x, -jnp.inf, lax.max, (1, 1, 3, 3), (1, 1, s, s), pad)
    sums = lax.reduce_window(x, 0.0, lax.add, (1, 1, 3, 3), (1, 1, s, s), pad)
    cnts = lax.reduce_window(jnp.ones_like(x), 0.0, lax.add, (1, 1, 3, 3), (1, 1, s, s), pad)
    return sums / cnts


# ------------------------------------- main ---------------------------------------

if __name__ == "__main__":
    key = jax.random.PRNGKey(0)
    kx, kp = jax.random.split(key)
    x = jax.random.normal(kx, (2, 4, 16, 16), jnp.float32)   # NCHW, like PyTorch

    cases = [
        dict(C_in=4, C_out=8, stride=2, mode='avg'),   # fused preprocess + strided avg
        dict(C_in=4, C_out=4, stride=1, mode='max'),   # pool-only max, stride 1
        dict(C_in=4, C_out=4, stride=2, mode='max'),   # pool-only max, strided
        dict(C_in=4, C_out=4, stride=1, mode='avg'),   # pool-only avg, stride 1
        dict(C_in=4, C_out=8, stride=2, mode='max'),   # fused preprocess + strided max
    ]
    for cfg in cases:
        mod = PoolingPallas(cfg['C_in'], cfg['C_out'], cfg['stride'], cfg['mode'], key=kp)
        out = jax.block_until_ready(mod(x))
        ref = _ref_forward(x, mod)
        np.testing.assert_allclose(np.asarray(out), np.asarray(ref),
                                   rtol=1e-5, atol=1e-5,
                                   err_msg='mismatch for {}'.format(cfg))

    print("KERNEL_OK")
</pallas_src>

<mosaic_0001>
module attributes {stable_mosaic.version = 11 : i64} {
  func.func @_pooling_kernel(%arg0: i32, %arg1: i32, %arg2: memref<2x4x256xf32, #tpu.memory_space<vmem>>, %arg3: memref<8x4xf32, #tpu.memory_space<vmem>>, %arg4: memref<8x1xf32, #tpu.memory_space<vmem>>, %arg5: memref<5x256xf32, #tpu.memory_space<vmem>>, %arg6: memref<256x64xf32, #tpu.memory_space<vmem>>, %arg7: memref<2x8x64xf32, #tpu.memory_space<vmem>>) attributes {dimension_semantics = [#tpu.dimension_semantics<parallel>, #tpu.dimension_semantics<parallel>], iteration_bounds = array<i64: 1, 1>, scalar_prefetch = 0 : i64, scratch_operands = 0 : i64, tpu.core_type = #tpu.core_type<tc>, window_params = [{transform_indices = @transform_0, window_bounds = array<i64: 2, 4, 256>}, {transform_indices = @transform_1, window_bounds = array<i64: 8, 4>}, {transform_indices = @transform_2, window_bounds = array<i64: 8, 1>}, {pipeline_mode = #tpu.pipeline_mode<synchronous>, transform_indices = @transform_3, window_bounds = array<i64: 5, 256>}, {pipeline_mode = #tpu.pipeline_mode<synchronous>, transform_indices = @transform_4, window_bounds = array<i64: 256, 64>}, {transform_indices = @transform_5, window_bounds = array<i64: 2, 8, 64>}]} {
    %c0 = arith.constant 0 : index
    %c0_0 = arith.constant 0 : index
    %0 = vector.load %arg3[%c0, %c0_0] : memref<8x4xf32, #tpu.memory_space<vmem>>, vector<8x4xf32>
    %c0_1 = arith.constant 0 : index
    %c0_2 = arith.constant 0 : index
    %1 = vector.load %arg4[%c0_1, %c0_2] : memref<8x1xf32, #tpu.memory_space<vmem>>, vector<8x1xf32>
    %c0_3 = arith.constant 0 : index
    %c0_4 = arith.constant 0 : index
    %c0_5 = arith.constant 0 : index
    %2 = vector.load %arg2[%c0_3, %c0_4, %c0_5] : memref<2x4x256xf32, #tpu.memory_space<vmem>>, vector<1x4x256xf32>
    %3 = vector.shape_cast %2 : vector<1x4x256xf32> to vector<4x256xf32>
    %cst = arith.constant 0.000000e+00 : f32
    %4 = vector.broadcast %cst : f32 to vector<4x256xf32>
    %5 = arith.maximumf %3, %4 : vector<4x256xf32>
    %cst_6 = arith.constant dense<0.000000e+00> : vector<8x256xf32>
    %6 = tpu.matmul %0, %5, %cst_6 {dimension_numbers = #tpu.dot_dimension_numbers<[1], [0], [0], [1], [0, 0, 1, 1], [], []>} : vector<8x4xf32>, vector<4x256xf32>, vector<8x256xf32> -> vector<8x256xf32>
    %7 = vector.broadcast %1 : vector<8x1xf32> to vector<8x256xf32>
    %8 = arith.addf %6, %7 : vector<8x256xf32>
    %c0_7 = arith.constant 0 : index
    %c0_8 = arith.constant 0 : index
    %9 = vector.load %arg5[%c0_7, %c0_8] : memref<5x256xf32, #tpu.memory_space<vmem>>, vector<1x256xf32>
    %c1 = arith.constant 1 : index
    %c0_9 = arith.constant 0 : index
    %10 = vector.load %arg5[%c1, %c0_9] : memref<5x256xf32, #tpu.memory_space<vmem>>, vector<1x256xf32>
    %c2 = arith.constant 2 : index
    %c0_10 = arith.constant 0 : index
    %11 = vector.load %arg5[%c2, %c0_10] : memref<5x256xf32, #tpu.memory_space<vmem>>, vector<1x256xf32>
    %c3 = arith.constant 3 : index
    %c0_11 = arith.constant 0 : index
    %12 = vector.load %arg5[%c3, %c0_11] : memref<5x256xf32, #tpu.memory_space<vmem>>, vector<1x256xf32>
    %c1_i32 = arith.constant 1 : i32
    %13 = tpu.dynamic_rotate %8 by %c1_i32 dim 1 : vector<8x256xf32>, i32 -> vector<8x256xf32>
    %14 = vector.broadcast %9 : vector<1x256xf32> to vector<8x256xf32>
    %15 = arith.mulf %13, %14 : vector<8x256xf32>
    %16 = arith.addf %15, %8 : vector<8x256xf32>
    %c255_i32 = arith.constant 255 : i32
    %17 = tpu.dynamic_rotate %8 by %c255_i32 dim 1 : vector<8x256xf32>, i32 -> vector<8x256xf32>
    %18 = vector.broadcast %10 : vector<1x256xf32> to vector<8x256xf32>
    %19 = arith.mulf %17, %18 : vector<8x256xf32>
    %20 = arith.addf %16, %19 : vector<8x256xf32>
    %c16_i32 = arith.constant 16 : i32
    %21 = tpu.dynamic_rotate %20 by %c16_i32 dim 1 : vector<8x256xf32>, i32 -> vector<8x256xf32>
    %22 = vector.broadcast %11 : vector<1x256xf32> to vector<8x256xf32>
    %23 = arith.mulf %21, %22 : vector<8x256xf32>
    %24 = arith.addf %23, %20 : vector<8x256xf32>
    %c240_i32 = arith.constant 240 : i32
    %25 = tpu.dynamic_rotate %20 by %c240_i32 dim 1 : vector<8x256xf32>, i32 -> vector<8x256xf32>
    %26 = vector.broadcast %12 : vector<1x256xf32> to vector<8x256xf32>
    %27 = arith.mulf %25, %26 : vector<8x256xf32>
    %28 = arith.addf %24, %27 : vector<8x256xf32>
    %c0_12 = arith.constant 0 : index
    %c0_13 = arith.constant 0 : index
    %29 = vector.load %arg6[%c0_12, %c0_13] : memref<256x64xf32, #tpu.memory_space<vmem>>, vector<256x64xf32>
    %cst_14 = arith.constant dense<0.000000e+00> : vector<8x64xf32>
    %30 = tpu.matmul %28, %29, %cst_14 {dimension_numbers = #tpu.dot_dimension_numbers<[1], [0], [0], [1], [0, 0, 1, 1], [], []>} : vector<8x256xf32>, vector<256x64xf32>, vector<8x64xf32> -> vector<8x64xf32>
    %c0_15 = arith.constant 0 : index
    %c0_16 = arith.constant 0 : index
    %c0_17 = arith.constant 0 : index
    %31 = vector.load %arg7[%c0_15, %c0_16, %c0_17] : memref<2x8x64xf32, #tpu.memory_space<vmem>>, vector<1x8x64xf32>
    %32 = vector.shape_cast %31 : vector<1x8x64xf32> to vector<8x64xf32>
    %33 = vector.shape_cast %30 : vector<8x64xf32> to vector<1x8x64xf32>
    tpu.vector_store %arg7[%c0_15, %c0_16, %c0_17], %33 {strides = array<i32>} : memref<2x8x64xf32, #tpu.memory_space<vmem>>, vector<1x8x64xf32>,
    %c1_18 = arith.constant 1 : index
    %c0_19 = arith.constant 0 : index
    %c0_20 = arith.constant 0 : index
    %34 = vector.load %arg2[%c1_18, %c0_19, %c0_20] : memref<2x4x256xf32, #tpu.memory_space<vmem>>, vector<1x4x256xf32>
    %35 = vector.shape_cast %34 : vector<1x4x256xf32> to vector<4x256xf32>
    %cst_21 = arith.constant 0.000000e+00 : f32
    %36 = vector.broadcast %cst_21 : f32 to vector<4x256xf32>
    %37 = arith.maximumf %35, %36 : vector<4x256xf32>
    %cst_22 = arith.constant dense<0.000000e+00> : vector<8x256xf32>
    %38 = tpu.matmul %0, %37, %cst_22 {dimension_numbers = #tpu.dot_dimension_numbers<[1], [0], [0], [1], [0, 0, 1, 1], [], []>} : vector<8x4xf32>, vector<4x256xf32>, vector<8x256xf32> -> vector<8x256xf32>
    %39 = vector.broadcast %1 : vector<8x1xf32> to vector<8x256xf32>
    %40 = arith.addf %38, %39 : vector<8x256xf32>
    %c0_23 = arith.constant 0 : index
    %c0_24 = arith.constant 0 : index
    %41 = vector.load %arg5[%c0_23, %c0_24] : memref<5x256xf32, #tpu.memory_space<vmem>>, vector<1x256xf32>
    %c1_25 = arith.constant 1 : index
    %c0_26 = arith.constant 0 : index
    %42 = vector.load %arg5[%c1_25, %c0_26] : memref<5x256xf32, #tpu.memory_space<vmem>>, vector<1x256xf32>
    %c2_27 = arith.constant 2 : index
    %c0_28 = arith.constant 0 : index
    %43 = vector.load %arg5[%c2_27, %c0_28] : memref<5x256xf32, #tpu.memory_space<vmem>>, vector<1x256xf32>
    %c3_29 = arith.constant 3 : index
    %c0_30 = arith.constant 0 : index
    %44 = vector.load %arg5[%c3_29, %c0_30] : memref<5x256xf32, #tpu.memory_space<vmem>>, vector<1x256xf32>
    %c1_i32_31 = arith.constant 1 : i32
    %45 = tpu.dynamic_rotate %40 by %c1_i32_31 dim 1 : vector<8x256xf32>, i32 -> vector<8x256xf32>
    %46 = vector.broadcast %41 : vector<1x256xf32> to vector<8x256xf32>
    %47 = arith.mulf %45, %46 : vector<8x256xf32>
    %48 = arith.addf %47, %40 : vector<8x256xf32>
    %c255_i32_32 = arith.constant 255 : i32
    %49 = tpu.dynamic_rotate %40 by %c255_i32_32 dim 1 : vector<8x256xf32>, i32 -> vector<8x256xf32>
    %50 = vector.broadcast %42 : vector<1x256xf32> to vector<8x256xf32>
    %51 = arith.mulf %49, %50 : vector<8x256xf32>
    %52 = arith.addf %48, %51 : vector<8x256xf32>
    %c16_i32_33 = arith.constant 16 : i32
    %53 = tpu.dynamic_rotate %52 by %c16_i32_33 dim 1 : vector<8x256xf32>, i32 -> vector<8x256xf32>
    %54 = vector.broadcast %43 : vector<1x256xf32> to vector<8x256xf32>
    %55 = arith.mulf %53, %54 : vector<8x256xf32>
    %56 = arith.addf %55, %52 : vector<8x256xf32>
    %c240_i32_34 = arith.constant 240 : i32
    %57 = tpu.dynamic_rotate %52 by %c240_i32_34 dim 1 : vector<8x256xf32>, i32 -> vector<8x256xf32>
    %58 = vector.broadcast %44 : vector<1x256xf32> to vector<8x256xf32>
    %59 = arith.mulf %57, %58 : vector<8x256xf32>
    %60 = arith.addf %56, %59 : vector<8x256xf32>
    %c0_35 = arith.constant 0 : index
    %c0_36 = arith.constant 0 : index
    %61 = vector.load %arg6[%c0_35, %c0_36] : memref<256x64xf32, #tpu.memory_space<vmem>>, vector<256x64xf32>
    %cst_37 = arith.constant dense<0.000000e+00> : vector<8x64xf32>
    %62 = tpu.matmul %60, %61, %cst_37 {dimension_numbers = #tpu.dot_dimension_numbers<[1], [0], [0], [1], [0, 0, 1, 1], [], []>} : vector<8x256xf32>, vector<256x64xf32>, vector<8x64xf32> -> vector<8x64xf32>
    %c1_38 = arith.constant 1 : index
    %c0_39 = arith.constant 0 : index
    %c0_40 = arith.constant 0 : index
    %63 = vector.load %arg7[%c1_38, %c0_39, %c0_40] : memref<2x8x64xf32, #tpu.memory_space<vmem>>, vector<1x8x64xf32>
    %64 = vector.shape_cast %63 : vector<1x8x64xf32> to vector<8x64xf32>
    %65 = vector.shape_cast %62 : vector<8x64xf32> to vector<1x8x64xf32>
    tpu.vector_store %arg7[%c1_38, %c0_39, %c0_40], %65 {strides = array<i32>} : memref<2x8x64xf32, #tpu.memory_space<vmem>>, vector<1x8x64xf32>,
    return
  }
  func.func @transform_0(%arg0: i32, %arg1: i32) -> (i32, i32, i32) {
    %c0_i32 = arith.constant 0 : i32
    %c0_i32_0 = arith.constant 0 : i32
    %c0_i32_1 = arith.constant 0 : i32
    return %arg0, %c0_i32, %c0_i32_0 : i32, i32, i32
  }
  func.func @transform_1(%arg0: i32, %arg1: i32) -> (i32, i32) {
    %c0_i32 = arith.constant 0 : i32
    %c0_i32_0 = arith.constant 0 : i32
    return %arg1, %c0_i32 : i32, i32
  }
  func.func @transform_2(%arg0: i32, %arg1: i32) -> (i32, i32) {
    %c0_i32 = arith.constant 0 : i32
    %c0_i32_0 = arith.constant 0 : i32
    return %arg1, %c0_i32 : i32, i32
  }
  func.func @transform_3(%arg0: i32, %arg1: i32) -> (i32, i32) {
    %c0_i32 = arith.constant 0 : i32
    %c0_i32_0 = arith.constant 0 : i32
    %c0_i32_1 = arith.constant 0 : i32
    return %c0_i32, %c0_i32_0 : i32, i32
  }
  func.func @transform_4(%arg0: i32, %arg1: i32) -> (i32, i32) {
    %c0_i32 = arith.constant 0 : i32
    %c0_i32_0 = arith.constant 0 : i32
    %c0_i32_1 = arith.constant 0 : i32
    return %c0_i32, %c0_i32_0 : i32, i32
  }
  func.func @transform_5(%arg0: i32, %arg1: i32) -> (i32, i32, i32) {
    %c0_i32 = arith.constant 0 : i32
    %c0_i32_0 = arith.constant 0 : i32
    return %arg0, %arg1, %c0_i32 : i32, i32, i32
  }
}

</mosaic_0001>

<llo_original>
// kernel: tpu_custom_call.1
$region0: #{tpu_custom_call.1}
  #allocation0 [shape = 'u32[]', space=smem, size = 0x4, offset = 0x4, fixed_abs, tag = 'smem constant byte address 0x4 - core index']
  #allocation1 [shape = 'u32[144,128]{1,0:T(1,128)}', space=vmem, size = 0x12000, scoped, tag = 'internal scratch']
  %s0 = inlined_call_operand.vmem [shape: f32[2,4,256], index: 0, kind: input, shape index: {}]
  %s1 = inlined_call_operand.vmem [shape: f32[8,4], index: 1, kind: input, shape index: {}]
  %s2 = inlined_call_operand.vmem [shape: f32[8,1], index: 2, kind: input, shape index: {}]
  %s3 = inlined_call_operand.vmem [shape: f32[5,256], index: 3, kind: input, shape index: {}]
  %s4 = inlined_call_operand.vmem [shape: f32[256,64], index: 4, kind: input, shape index: {}]
  %s5 = inlined_call_operand.hbm [shape: f32[2,8,64], index: 5, kind: output, shape index: {}]
  %s6 = sld [smem:[#allocation0]]
  $region30: #{tpu_custom_call.1} parent=0
    _
  %s8 = ssub.s32 1, %s6
  %s9 = scalar_select 0, %s8, %s6
  $region1: #{tpu_custom_call.1} parent=0
    #allocation2 [shape = 'u8[8192]{0}', space=vmem, size = 0x2000, scoped, tag = 'output window, operand 0, single buffered']
    #allocation3 [shape = 's32[1]{0}', space=sflag, size = 0x4, scoped, tag = 'scoped memory for tpu_custom_call.1']
    %10 = vsyncpa [#allocation3], 0
    // Predicated region
    $region2: #{tpu_custom_call.1} parent=1 // pred_check
      _
    $region3: #{tpu_custom_call.1} parent=1 // pred_check_branch
      %12 = sbr.rel (0) target = $region5
    $region4: #{tpu_custom_call.1} parent=1 // pred_region
      _
    $region5: #{tpu_custom_call.1} parent=1 // pred_fallthru
      _
    // Predicated region
    $region6: #{tpu_custom_call.1} parent=1 // pred_check
      _
    $region7: #{tpu_custom_call.1} parent=1 // pred_check_branch
      %14 = sbr.rel (0) target = $region9
    $region8: #{tpu_custom_call.1} parent=1 // pred_region
      _
    $region9: #{tpu_custom_call.1} parent=1 // pred_fallthru
      _
    // Predicated region
    $region10: #{tpu_custom_call.1} parent=1 // pred_check
      _
    $region11: #{tpu_custom_call.1} parent=1 // pred_check_branch
      %16 = sbr.rel (0) target = $region13
    $region12: #{tpu_custom_call.1} parent=1 // pred_region
      _
    $region13: #{tpu_custom_call.1} parent=1 // pred_fallthru
      _
    // Predicated region
    $region14: #{tpu_custom_call.1} parent=1 // pred_check
      _
    $region15: #{tpu_custom_call.1} parent=1 // pred_check_branch
      %18 = sbr.rel (0) target = $region17
    $region16: #{tpu_custom_call.1} parent=1 // pred_region
      _
    $region17: #{tpu_custom_call.1} parent=1 // pred_fallthru
      _
    // Predicated region
    $region18: #{tpu_custom_call.1} parent=1 // pred_check
      _
    $region19: #{tpu_custom_call.1} parent=1 // pred_check_branch
      %20 = sbr.rel (0) target = $region21
    $region20: #{tpu_custom_call.1} parent=1 // pred_region
      _
    $region21: #{tpu_custom_call.1} parent=1 // pred_fallthru
      _
    %v21 = vld [vmem:[%s1] sm:$0xff]
    %v22 = vld [vmem:[%s2] sm:$0xff]
    %v23 = vld [vmem:[%s0] sm:$0xff]
    %v24 = vmax.f32 %v23, 0.0
    %26 = vset.pattern.permute.xlu0 0
    %27 = vperm.xlu0 %26, %v22
    %v28 = vpop.permute.xlu0 %27
    %v31 = vcombine.high %v24, %v24
    %vm32 = vcmask 31744
    %v34 = vsel %vm32, %v21, 0
    %vm36 = vcmask 1043456
    %v37 = vsel %vm36, %v24, 0
    %v39 = vsel %vm36, %v31, 0
    %41 = vmatprep.subr.mxu0 %v39
    %42 = vmatpush1.msra.mxu0 %v37
    %43 = vmatprep.subr.mxu0 0.0
    %44 = vmatpush1.msra.mxu0 0.0
    %45 = vmatprep.subr.mxu0 0.0
    %46 = vmatpush1.msra.mxu0 0.0
    %47 = vmatprep.subr.mxu0 0.0
    %48 = vmatpush1.msra.mxu0 0.0
    %49 = vmatprep.subr.mxu0 0.0
    %50 = vmatpush1.msra.mxu0 0.0
    %51 = vmatprep.subr.mxu0 0.0
    %52 = vmatpush1.msra.mxu0 0.0
    %53 = vmatprep.subr.mxu0 0.0
    %54 = vmatpush1.msra.mxu0 0.0
    %55 = vmatprep.subr.mxu0 0.0
    %56 = vmatpush1.msra.mxu0 0.0
    %57 = vmatprep.subr.mxu0 0.0
    %58 = vmatpush1.msra.mxu0 0.0
    %59 = vmatprep.subr.mxu0 0.0
    %60 = vmatpush1.msra.mxu0 0.0
    %61 = vmatprep.subr.mxu0 0.0
    %62 = vmatpush1.msra.mxu0 0.0
    %63 = vmatprep.subr.mxu0 0.0
    %64 = vmatpush1.msra.mxu0 0.0
    %65 = vmatprep.subr.mxu0 0.0
    %66 = vmatpush1.msra.mxu0 0.0
    %67 = vmatprep.subr.mxu0 0.0
    %68 = vmatpush1.msra.mxu0 0.0
    %69 = vmatprep.subr.mxu0 0.0
    %70 = vmatpush1.msra.mxu0 0.0
    %71 = vmatprep.subr.mxu0 0.0
    %72 = vmatpush1.msra.mxu0 0.0
    %73 = vmatprep.subr.mxu0 0.0
    %74 = vmatpush1.msra.mxu0 0.0
    %75 = vmatprep.subr.mxu0 0.0
    %76 = vmatpush1.msra.mxu0 0.0
    %77 = vmatprep.subr.mxu0 0.0
    %78 = vmatpush1.msra.mxu0 0.0
    %79 = vmatprep.subr.mxu0 0.0
    %80 = vmatpush1.msra.mxu0 0.0
    %81 = vmatprep.subr.mxu0 0.0
    %82 = vmatpush1.msra.mxu0 0.0
    %83 = vmatprep.subr.mxu0 0.0
    %84 = vmatpush1.msra.mxu0 0.0
    %85 = vmatprep.subr.mxu0 0.0
    %86 = vmatpush1.msra.mxu0 0.0
    %87 = vmatprep.subr.mxu0 0.0
    %88 = vmatpush1.msra.mxu0 0.0
    %89 = vmatprep.subr.mxu0 0.0
    %90 = vmatpush1.msra.mxu0 0.0
    %91 = vmatprep.subr.mxu0 0.0
    %92 = vmatpush1.msra.mxu0 0.0
    %93 = vmatprep.subr.mxu0 0.0
    %94 = vmatpush1.msra.mxu0 0.0
    %95 = vmatprep.subr.mxu0 0.0
    %96 = vmatpush1.msra.mxu0 0.0
    %97 = vmatprep.subr.mxu0 0.0
    %98 = vmatpush1.msra.mxu0 0.0
    %99 = vmatprep.subr.mxu0 0.0
    %100 = vmatpush1.msra.mxu0 0.0
    %101 = vmatprep.subr.mxu0 0.0
    %102 = vmatpush1.msra.mxu0 0.0
    %103 = vmatprep.subr.mxu0 0.0
    %104 = vmatpush1.msra.mxu0 0.0
    %105 = vmatprep.mubr.f32.mxu0 0.0
    %106 = vmatmul.mubr.f32.gmra.mrb[0].mxu0 %v34
    %v107 = vpop.f32.mrb[0].mxu0
    %v108 = vadd.f32 %v28, %v107
    %v109 = vpop.f32.mrb[0].mxu0
    %v110 = vadd.f32 %v28, %v109
    %111 = vdwg.mxu0
    %v112 = vld [vmem:[%s3] ss:$8 sm:$0x3]
    %s113 = scalar_lea.vmem %s3, 1
    %v114 = vld [vmem:[%s113] ss:$8 sm:$0x3]
    %s115 = scalar_lea.vmem %s3, 2
    %v116 = vld [vmem:[%s115] ss:$8 sm:$0x3]
    %s117 = scalar_lea.vmem %s3, 3
    %v118 = vld [vmem:[%s117] ss:$8 sm:$0x3]
    %119 = vrot.lane.b32.xlu0 %v108, 1
    %v120 = vpop.permute.xlu0 %119
    %121 = vrot.lane.b32.xlu0 %v110, 1
    %v122 = vpop.permute.xlu0 %121
    %v123 = vlaneseq
    %v124 = vand.u32 %v123, 127
    %vm125 = vcmp.lt.s32.totalorder %v124, 1
    %v126 = vsel %vm125, %v120, %v122
    %v127 = vsel %vm125, %v122, %v120
    %v129 = vlaneseq
    %v130 = vshrl.u32 %v129, 7
    %v131 = vsub.s32 0, %v130
    %v132 = vrot.slane %v112, %v131
    %v133 = vlaneseq
    %v134 = vshrl.u32 %v133, 7
    %v135 = vsub.s32 1, %v134
    %v136 = vrot.slane %v112, %v135
    %v139 = vmul.f32 %v127, %v132
    %v140 = vmul.f32 %v126, %v136
    %v141 = vadd.f32 %v139, %v108
    %v142 = vadd.f32 %v140, %v110
    %143 = vrot.lane.b32.xlu0 %v108, 127
    %v144 = vpop.permute.xlu0 %143
    %145 = vrot.lane.b32.xlu0 %v110, 127
    %v146 = vpop.permute.xlu0 %145
    %vm147 = vcmp.lt.s32.totalorder %v124, 127
    %v148 = vsel %vm147, %v144, %v146
    %v149 = vsel %vm147, %v146, %v144
    %v151 = vlaneseq
    %v152 = vshrl.u32 %v151, 7
    %v153 = vsub.s32 0, %v152
    %v154 = vrot.slane %v114, %v153
    %v155 = vlaneseq
    %v156 = vshrl.u32 %v155, 7
    %v157 = vsub.s32 1, %v156
    %v158 = vrot.slane %v114, %v157
    %v161 = vmul.f32 %v148, %v154
    %v162 = vmul.f32 %v149, %v158
    %v163 = vadd.f32 %v141, %v161
    %v164 = vadd.f32 %v142, %v162
    %165 = vrot.lane.b32.xlu0 %v163, 16
    %v166 = vpop.permute.xlu0 %165
    %167 = vrot.lane.b32.xlu0 %v164, 16
    %v168 = vpop.permute.xlu0 %167
    %vm169 = vcmp.lt.s32.totalorder %v124, 16
    %v170 = vsel %vm169, %v166, %v168
    %v171 = vsel %vm169, %v168, %v166
    %v173 = vlaneseq
    %v174 = vshrl.u32 %v173, 7
    %v175 = vsub.s32 0, %v174
    %v176 = vrot.slane %v116, %v175
    %v177 = vlaneseq
    %v178 = vshrl.u32 %v177, 7
    %v179 = vsub.s32 1, %v178
    %v180 = vrot.slane %v116, %v179
    %v183 = vmul.f32 %v171, %v176
    %v184 = vmul.f32 %v170, %v180
    %v185 = vadd.f32 %v183, %v163
    %v186 = vadd.f32 %v184, %v164
    %187 = vrot.lane.b32.xlu0 %v163, 112
    %v188 = vpop.permute.xlu0 %187
    %189 = vrot.lane.b32.xlu0 %v164, 112
    %v190 = vpop.permute.xlu0 %189
    %vm191 = vcmp.lt.s32.totalorder %v124, 112
    %v192 = vsel %vm191, %v188, %v190
    %v193 = vsel %vm191, %v190, %v188
    %v195 = vlaneseq
    %v196 = vshrl.u32 %v195, 7
    %v197 = vsub.s32 0, %v196
    %v198 = vrot.slane %v118, %v197
    %v199 = vlaneseq
    %v200 = vshrl.u32 %v199, 7
    %v201 = vsub.s32 1, %v200
    %v202 = vrot.slane %v118, %v201
    %v205 = vmul.f32 %v192, %v198
    %v206 = vmul.f32 %v193, %v202
    %v207 = vadd.f32 %v185, %v205
    %v208 = vadd.f32 %v186, %v206
    %v209 = vld [vmem:[%s4] sm:$0xff]
    %v210 = vld [vmem:[%s4 + $0x8] sm:$0xff]
    %v211 = vld [vmem:[%s4 + $0x10] sm:$0xff]
    %v212 = vld [vmem:[%s4 + $0x18] sm:$0xff]
    %v213 = vld [vmem:[%s4 + $0x20] sm:$0xff]
    %v214 = vld [vmem:[%s4 + $0x28] sm:$0xff]
    %v215 = vld [vmem:[%s4 + $0x30] sm:$0xff]
    %v216 = vld [vmem:[%s4 + $0x38] sm:$0xff]
    %v217 = vld [vmem:[%s4 + $0x40] sm:$0xff]
    %v218 = vld [vmem:[%s4 + $0x48] sm:$0xff]
    %v219 = vld [vmem:[%s4 + $0x50] sm:$0xff]
    %v220 = vld [vmem:[%s4 + $0x58] sm:$0xff]
    %v221 = vld [vmem:[%s4 + $0x60] sm:$0xff]
    %v222 = vld [vmem:[%s4 + $0x68] sm:$0xff]
    %v223 = vld [vmem:[%s4 + $0x70] sm:$0xff]
    %v224 = vld [vmem:[%s4 + $0x78] sm:$0xff]
    %v225 = vld [vmem:[%s4 + $0x80] sm:$0xff]
    %v226 = vld [vmem:[%s4 + $0x88] sm:$0xff]
    %v227 = vld [vmem:[%s4 + $0x90] sm:$0xff]
    %v228 = vld [vmem:[%s4 + $0x98] sm:$0xff]
    %v229 = vld [vmem:[%s4 + $0xa0] sm:$0xff]
    %v230 = vld [vmem:[%s4 + $0xa8] sm:$0xff]
    %v231 = vld [vmem:[%s4 + $0xb0] sm:$0xff]
    %v232 = vld [vmem:[%s4 + $0xb8] sm:$0xff]
    %v233 = vld [vmem:[%s4 + $0xc0] sm:$0xff]
    %v234 = vld [vmem:[%s4 + $0xc8] sm:$0xff]
    %v235 = vld [vmem:[%s4 + $0xd0] sm:$0xff]
    %v236 = vld [vmem:[%s4 + $0xd8] sm:$0xff]
    %v237 = vld [vmem:[%s4 + $0xe0] sm:$0xff]
    %v238 = vld [vmem:[%s4 + $0xe8] sm:$0xff]
    %v239 = vld [vmem:[%s4 + $0xf0] sm:$0xff]
    %v240 = vld [vmem:[%s4 + $0xf8] sm:$0xff]
    %241 = vmatprep.subr.mxu0 0.0
    %242 = vmatpush1.msra.mxu0 %v209
    %243 = vmatprep.subr.mxu0 0.0
    %244 = vmatpush1.msra.mxu0 %v210
    %245 = vmatprep.subr.mxu0 0.0
    %246 = vmatpush1.msra.mxu0 %v211
    %247 = vmatprep.subr.mxu0 0.0
    %248 = vmatpush1.msra.mxu0 %v212
    %249 = vmatprep.subr.mxu0 0.0
    %250 = vmatpush1.msra.mxu0 %v213
    %251 = vmatprep.subr.mxu0 0.0
    %252 = vmatpush1.msra.mxu0 %v214
    %253 = vmatprep.subr.mxu0 0.0
    %254 = vmatpush1.msra.mxu0 %v215
    %255 = vmatprep.subr.mxu0 0.0
    %256 = vmatpush1.msra.mxu0 %v216
    %257 = vmatprep.subr.mxu0 0.0
    %258 = vmatpush1.msra.mxu0 %v217
    %259 = vmatprep.subr.mxu0 0.0
    %260 = vmatpush1.msra.mxu0 %v218
    %261 = vmatprep.subr.mxu0 0.0
    %262 = vmatpush1.msra.mxu0 %v219
    %263 = vmatprep.subr.mxu0 0.0
    %264 = vmatpush1.msra.mxu0 %v220
    %265 = vmatprep.subr.mxu0 0.0
    %266 = vmatpush1.msra.mxu0 %v221
    %267 = vmatprep.subr.mxu0 0.0
    %268 = vmatpush1.msra.mxu0 %v222
    %269 = vmatprep.subr.mxu0 0.0
    %270 = vmatpush1.msra.mxu0 %v223
    %271 = vmatprep.subr.mxu0 0.0
    %272 = vmatpush1.msra.mxu0 %v224
    %273 = vmatprep.subr.mxu0 0.0
    %274 = vmatpush1.msra.mxu0 %v225
    %275 = vmatprep.subr.mxu0 0.0
    %276 = vmatpush1.msra.mxu0 %v226
    %277 = vmatprep.subr.mxu0 0.0
    %278 = vmatpush1.msra.mxu0 %v227
    %279 = vmatprep.subr.mxu0 0.0
    %280 = vmatpush1.msra.mxu0 %v228
    %281 = vmatprep.subr.mxu0 0.0
    %282 = vmatpush1.msra.mxu0 %v229
    %283 = vmatprep.subr.mxu0 0.0
    %284 = vmatpush1.msra.mxu0 %v230
    %285 = vmatprep.subr.mxu0 0.0
    %286 = vmatpush1.msra.mxu0 %v231
    %287 = vmatprep.subr.mxu0 0.0
    %288 = vmatpush1.msra.mxu0 %v232
    %289 = vmatprep.subr.mxu0 0.0
    %290 = vmatpush1.msra.mxu0 %v233
    %291 = vmatprep.subr.mxu0 0.0
    %292 = vmatpush1.msra.mxu0 %v234
    %293 = vmatprep.subr.mxu0 0.0
    %294 = vmatpush1.msra.mxu0 %v235
    %295 = vmatprep.subr.mxu0 0.0
    %296 = vmatpush1.msra.mxu0 %v236
    %297 = vmatprep.subr.mxu0 0.0
    %298 = vmatpush1.msra.mxu0 %v237
    %299 = vmatprep.subr.mxu0 0.0
    %300 = vmatpush1.msra.mxu0 %v238
    %301 = vmatprep.subr.mxu0 0.0
    %302 = vmatpush1.msra.mxu0 %v239
    %303 = vmatprep.subr.mxu0 0.0
    %304 = vmatpush1.msra.mxu0 %v240
    %305 = vmatprep.mubr.f32.mxu0 %v208
    %306 = vmatmul.mubr.f32.gmra.mrb[0].mxu0 %v207
    %v307 = vpop.f32.mrb[0].mxu0
    %v308 = vadd.f32 0.0, %v307
    %v309 = vpop.f32.mrb[0].mxu0
    %310 = vdwg.mxu0
    %vm311 = vcmask 523264
    %312 = vst.msk [vmem:[#allocation2] sm:$0xff] %vm311, %v308
    %s313 = scalar_lea.vmem %s0, 8
    %v314 = vld [vmem:[%s313] sm:$0xff]
    %v315 = vmax.f32 %v314, 0.0
    %v317 = vcombine.high %v315, %v315
    %v318 = vsel %vm36, %v315, 0
    %v320 = vsel %vm36, %v317, 0
    %322 = vmatprep.subr.mxu0 %v320
    %323 = vmatpush1.msra.mxu0 %v318
    %324 = vmatprep.subr.mxu0 0.0
    %325 = vmatpush1.msra.mxu0 0.0
    %326 = vmatprep.subr.mxu0 0.0
    %327 = vmatpush1.msra.mxu0 0.0
    %328 = vmatprep.subr.mxu0 0.0
    %329 = vmatpush1.msra.mxu0 0.0
    %330 = vmatprep.subr.mxu0 0.0
    %331 = vmatpush1.msra.mxu0 0.0
    %332 = vmatprep.subr.mxu0 0.0
    %333 = vmatpush1.msra.mxu0 0.0
    %334 = vmatprep.subr.mxu0 0.0
    %335 = vmatpush1.msra.mxu0 0.0
    %336 = vmatprep.subr.mxu0 0.0
    %337 = vmatpush1.msra.mxu0 0.0
    %338 = vmatprep.subr.mxu0 0.0
    %339 = vmatpush1.msra.mxu0 0.0
    %340 = vmatprep.subr.mxu0 0.0
    %341 = vmatpush1.msra.mxu0 0.0
    %342 = vmatprep.subr.mxu0 0.0
    %343 = vmatpush1.msra.mxu0 0.0
    %344 = vmatprep.subr.mxu0 0.0
    %345 = vmatpush1.msra.mxu0 0.0
    %346 = vmatprep.subr.mxu0 0.0
    %347 = vmatpush1.msra.mxu0 0.0
    %348 = vmatprep.subr.mxu0 0.0
    %349 = vmatpush1.msra.mxu0 0.0
    %350 = vmatprep.subr.mxu0 0.0
    %351 = vmatpush1.msra.mxu0 0.0
    %352 = vmatprep.subr.mxu0 0.0
    %353 = vmatpush1.msra.mxu0 0.0
    %354 = vmatprep.subr.mxu0 0.0
    %355 = vmatpush1.msra.mxu0 0.0
    %356 = vmatprep.subr.mxu0 0.0
    %357 = vmatpush1.msra.mxu0 0.0
    %358 = vmatprep.subr.mxu0 0.0
    %359 = vmatpush1.msra.mxu0 0.0
    %360 = vmatprep.subr.mxu0 0.0
    %361 = vmatpush1.msra.mxu0 0.0
    %362 = vmatprep.subr.mxu0 0.0
    %363 = vmatpush1.msra.mxu0 0.0
    %364 = vmatprep.subr.mxu0 0.0
    %365 = vmatpush1.msra.mxu0 0.0
    %366 = vmatprep.subr.mxu0 0.0
    %367 = vmatpush1.msra.mxu0 0.0
    %368 = vmatprep.subr.mxu0 0.0
    %369 = vmatpush1.msra.mxu0 0.0
    %370 = vmatprep.subr.mxu0 0.0
    %371 = vmatpush1.msra.mxu0 0.0
    %372 = vmatprep.subr.mxu0 0.0
    %373 = vmatpush1.msra.mxu0 0.0
    %374 = vmatprep.subr.mxu0 0.0
    %375 = vmatpush1.msra.mxu0 0.0
    %376 = vmatprep.subr.mxu0 0.0
    %377 = vmatpush1.msra.mxu0 0.0
    %378 = vmatprep.subr.mxu0 0.0
    %379 = vmatpush1.msra.mxu0 0.0
    %380 = vmatprep.subr.mxu0 0.0
    %381 = vmatpush1.msra.mxu0 0.0
    %382 = vmatprep.subr.mxu0 0.0
    %383 = vmatpush1.msra.mxu0 0.0
    %384 = vmatprep.subr.mxu0 0.0
    %385 = vmatpush1.msra.mxu0 0.0
    %386 = vmatprep.mubr.f32.mxu0 0.0
    %387 = vmatmul.mubr.f32.gmra.mrb[0].mxu0 %v34
    %v388 = vpop.f32.mrb[0].mxu0
    %v389 = vadd.f32 %v28, %v388
    %v390 = vpop.f32.mrb[0].mxu0
    %v391 = vadd.f32 %v28, %v390
    %392 = vdwg.mxu0
    %v393 = vld [vmem:[%s3] ss:$8 sm:$0x3]
    %v394 = vld [vmem:[%s113] ss:$8 sm:$0x3]
    %v395 = vld [vmem:[%s115] ss:$8 sm:$0x3]
    %v396 = vld [vmem:[%s117] ss:$8 sm:$0x3]
    %397 = vrot.lane.b32.xlu0 %v389, 1
    %v398 = vpop.permute.xlu0 %397
    %399 = vrot.lane.b32.xlu0 %v391, 1
    %v400 = vpop.permute.xlu0 %399
    %v401 = vsel %vm125, %v398, %v400
    %v402 = vsel %vm125, %v400, %v398
    %v404 = vlaneseq
    %v405 = vshrl.u32 %v404, 7
    %v406 = vsub.s32 0, %v405
    %v407 = vrot.slane %v393, %v406
    %v408 = vlaneseq
    %v409 = vshrl.u32 %v408, 7
    %v410 = vsub.s32 1, %v409
    %v411 = vrot.slane %v393, %v410
    %v414 = vmul.f32 %v402, %v407
    %v415 = vmul.f32 %v401, %v411
    %v416 = vadd.f32 %v414, %v389
    %v417 = vadd.f32 %v415, %v391
    %418 = vrot.lane.b32.xlu0 %v389, 127
    %v419 = vpop.permute.xlu0 %418
    %420 = vrot.lane.b32.xlu0 %v391, 127
    %v421 = vpop.permute.xlu0 %420
    %v422 = vsel %vm147, %v419, %v421
    %v423 = vsel %vm147, %v421, %v419
    %v425 = vlaneseq
    %v426 = vshrl.u32 %v425, 7
    %v427 = vsub.s32 0, %v426
    %v428 = vrot.slane %v394, %v427
    %v429 = vlaneseq
    %v430 = vshrl.u32 %v429, 7
    %v431 = vsub.s32 1, %v430
    %v432 = vrot.slane %v394, %v431
    %v435 = vmul.f32 %v422, %v428
    %v436 = vmul.f32 %v423, %v432
    %v437 = vadd.f32 %v416, %v435
    %v438 = vadd.f32 %v417, %v436
    %439 = vrot.lane.b32.xlu0 %v437, 16
    %v440 = vpop.permute.xlu0 %439
    %441 = vrot.lane.b32.xlu0 %v438, 16
    %v442 = vpop.permute.xlu0 %441
    %v443 = vsel %vm169, %v440, %v442
    %v444 = vsel %vm169, %v442, %v440
    %v446 = vlaneseq
    %v447 = vshrl.u32 %v446, 7
    %v448 = vsub.s32 0, %v447
    %v449 = vrot.slane %v395, %v448
    %v450 = vlaneseq
    %v451 = vshrl.u32 %v450, 7
    %v452 = vsub.s32 1, %v451
    %v453 = vrot.slane %v395, %v452
    %v456 = vmul.f32 %v444, %v449
    %v457 = vmul.f32 %v443, %v453
    %v458 = vadd.f32 %v456, %v437
    %v459 = vadd.f32 %v457, %v438
    %460 = vrot.lane.b32.xlu0 %v437, 112
    %v461 = vpop.permute.xlu0 %460
    %462 = vrot.lane.b32.xlu0 %v438, 112
    %v463 = vpop.permute.xlu0 %462
    %v464 = vsel %vm191, %v461, %v463
    %v465 = vsel %vm191, %v463, %v461
    %v467 = vlaneseq
    %v468 = vshrl.u32 %v467, 7
    %v469 = vsub.s32 0, %v468
    %v470 = vrot.slane %v396, %v469
    %v471 = vlaneseq
    %v472 = vshrl.u32 %v471, 7
    %v473 = vsub.s32 1, %v472
    %v474 = vrot.slane %v396, %v473
    %v477 = vmul.f32 %v464, %v470
    %v478 = vmul.f32 %v465, %v474
    %v479 = vadd.f32 %v458, %v477
    %v480 = vadd.f32 %v459, %v478
    %v481 = vld [vmem:[%s4] sm:$0xff]
    %v482 = vld [vmem:[%s4 + $0x8] sm:$0xff]
    %v483 = vld [vmem:[%s4 + $0x10] sm:$0xff]
    %v484 = vld [vmem:[%s4 + $0x18] sm:$0xff]
    %v485 = vld [vmem:[%s4 + $0x20] sm:$0xff]
    %v486 = vld [vmem:[%s4 + $0x28] sm:$0xff]
    %v487 = vld [vmem:[%s4 + $0x30] sm:$0xff]
    %v488 = vld [vmem:[%s4 + $0x38] sm:$0xff]
    %v489 = vld [vmem:[%s4 + $0x40] sm:$0xff]
    %v490 = vld [vmem:[%s4 + $0x48] sm:$0xff]
    %v491 = vld [vmem:[%s4 + $0x50] sm:$0xff]
    %v492 = vld [vmem:[%s4 + $0x58] sm:$0xff]
    %v493 = vld [vmem:[%s4 + $0x60] sm:$0xff]
    %v494 = vld [vmem:[%s4 + $0x68] sm:$0xff]
    %v495 = vld [vmem:[%s4 + $0x70] sm:$0xff]
    %v496 = vld [vmem:[%s4 + $0x78] sm:$0xff]
    %v497 = vld [vmem:[%s4 + $0x80] sm:$0xff]
    %v498 = vld [vmem:[%s4 + $0x88] sm:$0xff]
    %v499 = vld [vmem:[%s4 + $0x90] sm:$0xff]
    %v500 = vld [vmem:[%s4 + $0x98] sm:$0xff]
    %v501 = vld [vmem:[%s4 + $0xa0] sm:$0xff]
    %v502 = vld [vmem:[%s4 + $0xa8] sm:$0xff]
    %v503 = vld [vmem:[%s4 + $0xb0] sm:$0xff]
    %v504 = vld [vmem:[%s4 + $0xb8] sm:$0xff]
    %v505 = vld [vmem:[%s4 + $0xc0] sm:$0xff]
    %v506 = vld [vmem:[%s4 + $0xc8] sm:$0xff]
    %v507 = vld [vmem:[%s4 + $0xd0] sm:$0xff]
    %v508 = vld [vmem:[%s4 + $0xd8] sm:$0xff]
    %v509 = vld [vmem:[%s4 + $0xe0] sm:$0xff]
    %v510 = vld [vmem:[%s4 + $0xe8] sm:$0xff]
    %v511 = vld [vmem:[%s4 + $0xf0] sm:$0xff]
    %v512 = vld [vmem:[%s4 + $0xf8] sm:$0xff]
    %513 = vmatprep.subr.mxu0 0.0
    %514 = vmatpush1.msra.mxu0 %v481
    %515 = vmatprep.subr.mxu0 0.0
    %516 = vmatpush1.msra.mxu0 %v482
    %517 = vmatprep.subr.mxu0 0.0
    %518 = vmatpush1.msra.mxu0 %v483
    %519 = vmatprep.subr.mxu0 0.0
    %520 = vmatpush1.msra.mxu0 %v484
    %521 = vmatprep.subr.mxu0 0.0
    %522 = vmatpush1.msra.mxu0 %v485
    %523 = vmatprep.subr.mxu0 0.0
    %524 = vmatpush1.msra.mxu0 %v486
    %525 = vmatprep.subr.mxu0 0.0
    %526 = vmatpush1.msra.mxu0 %v487
    %527 = vmatprep.subr.mxu0 0.0
    %528 = vmatpush1.msra.mxu0 %v488
    %529 = vmatprep.subr.mxu0 0.0
    %530 = vmatpush1.msra.mxu0 %v489
    %531 = vmatprep.subr.mxu0 0.0
    %532 = vmatpush1.msra.mxu0 %v490
    %533 = vmatprep.subr.mxu0 0.0
    %534 = vmatpush1.msra.mxu0 %v491
    %535 = vmatprep.subr.mxu0 0.0
    %536 = vmatpush1.msra.mxu0 %v492
    %537 = vmatprep.subr.mxu0 0.0
    %538 = vmatpush1.msra.mxu0 %v493
    %539 = vmatprep.subr.mxu0 0.0
    %540 = vmatpush1.msra.mxu0 %v494
    %541 = vmatprep.subr.mxu0 0.0
    %542 = vmatpush1.msra.mxu0 %v495
    %543 = vmatprep.subr.mxu0 0.0
    %544 = vmatpush1.msra.mxu0 %v496
    %545 = vmatprep.subr.mxu0 0.0
    %546 = vmatpush1.msra.mxu0 %v497
    %547 = vmatprep.subr.mxu0 0.0
    %548 = vmatpush1.msra.mxu0 %v498
    %549 = vmatprep.subr.mxu0 0.0
    %550 = vmatpush1.msra.mxu0 %v499
    %551 = vmatprep.subr.mxu0 0.0
    %552 = vmatpush1.msra.mxu0 %v500
    %553 = vmatprep.subr.mxu0 0.0
    %554 = vmatpush1.msra.mxu0 %v501
    %555 = vmatprep.subr.mxu0 0.0
    %556 = vmatpush1.msra.mxu0 %v502
    %557 = vmatprep.subr.mxu0 0.0
    %558 = vmatpush1.msra.mxu0 %v503
    %559 = vmatprep.subr.mxu0 0.0
    %560 = vmatpush1.msra.mxu0 %v504
    %561 = vmatprep.subr.mxu0 0.0
    %562 = vmatpush1.msra.mxu0 %v505
    %563 = vmatprep.subr.mxu0 0.0
    %564 = vmatpush1.msra.mxu0 %v506
    %565 = vmatprep.subr.mxu0 0.0
    %566 = vmatpush1.msra.mxu0 %v507
    %567 = vmatprep.subr.mxu0 0.0
    %568 = vmatpush1.msra.mxu0 %v508
    %569 = vmatprep.subr.mxu0 0.0
    %570 = vmatpush1.msra.mxu0 %v509
    %571 = vmatprep.subr.mxu0 0.0
    %572 = vmatpush1.msra.mxu0 %v510
    %573 = vmatprep.subr.mxu0 0.0
    %574 = vmatpush1.msra.mxu0 %v511
    %575 = vmatprep.subr.mxu0 0.0
    %576 = vmatpush1.msra.mxu0 %v512
    %577 = vmatprep.mubr.f32.mxu0 %v480
    %578 = vmatmul.mubr.f32.gmra.mrb[0].mxu0 %v479
    %v579 = vpop.f32.mrb[0].mxu0
    %v580 = vadd.f32 0.0, %v579
    %v581 = vpop.f32.mrb[0].mxu0
    %582 = vdwg.mxu0
    %s583 = scalar_lea.vmem [#allocation2], 8
    %584 = vst.msk [vmem:[%s583] sm:$0xff] %vm311, %v580
    // Predicated region
    $region22: #{tpu_custom_call.1} parent=1 // pred_check
      _
    $region23: #{tpu_custom_call.1} parent=1 // pred_check_branch
      %586 = sbr.rel (0) target = $region25
    $region24: #{tpu_custom_call.1} parent=1 // pred_region
      %s588 = ssub.s32 256, 256
      %589 = vsyncadd [#allocation3], %s588
      %s590 = sshll.u32 [#allocation2], 4
      %s591 = int_to_ptr.vmem [resolvable:$true] %s590
      %596 = dma.vmem_to_hbm [thread:$0]  %s591, 256, %s5, [#allocation3], 128, 128, 8
    $region25: #{tpu_custom_call.1} parent=1 // pred_fallthru
      _
    // Predicated region
    $region26: #{tpu_custom_call.1} parent=1 // pred_check
      _
    $region27: #{tpu_custom_call.1} parent=1 // pred_check_branch
      %598 = sbr.rel (0) target = $region29
    $region28: #{tpu_custom_call.1} parent=1 // pred_region
      %599 = dma.done [#allocation3], 256
    $region29: #{tpu_custom_call.1} parent=1 // pred_fallthru
      _
    %600 = vsyncpa [#allocation3], 1

</llo_original>
